<compile_context>
chip_gen: v7x
topology: tpu7x:2x2x1
jax: 0.10.0
libtpu: 0.0.40
codegen_flags: <defaults>
</compile_context>

<pallas_src>
import jax
import jax.numpy as jnp
from jax.experimental import pallas as pl
from jax.experimental.pallas import tpu as pltpu


def _single_variance_kernel(var_ref, out_ref):
    # var_ref: (1,) float32 in SMEM  (the learnable scalar parameter)
    # out_ref: (1, 128) float32 in VMEM (lane-dense; only [0, 0] is consumed)
    v = var_ref[0]                                                   # scalar-core load
    scaled = jnp.full(out_ref.shape, v * 10.0, dtype=jnp.float32)    # broadcast to one vreg
    out_ref[...] = jnp.clip(jnp.exp(scaled), 1e-06, 1e06)            # EUP exp + VPU clamp


def single_variance_forward(variance_scalar):
    """Pallas path. variance_scalar: 0-d float32 parameter.
    Returns 0-d float32 = clip(exp(variance * 10), 1e-6, 1e6)."""
    var_smem = jnp.reshape(variance_scalar.astype(jnp.float32), (1,))
    out = pl.pallas_call(
        _single_variance_kernel,
        out_shape=jax.ShapeDtypeStruct((1, 128), jnp.float32),
        in_specs=[pl.BlockSpec(memory_space=pltpu.MemorySpace.SMEM)],
        out_specs=pl.BlockSpec((1, 128), lambda: (0, 0)),
    )(var_smem)
    return out[0, 0]  # 0-d, matching PyTorch's 0-d tensor output


def single_variance_forward_xla(variance_scalar):
    """Recommended production path: plain JAX, fuses into the consumer."""
    v = variance_scalar.astype(jnp.float32)
    return jnp.clip(jnp.exp(v * 10.0), 1e-06, 1e06)


if __name__ == "__main__":
    # Deterministic parameter init (NeuS typically uses init_val = 0.3).
    _ = jax.random.PRNGKey(0)  # harness determinism only; the param is a fixed init
    init_val = 0.3
    variance = jnp.asarray(init_val, dtype=jnp.float32)

    result = single_variance_forward(variance)
    result = jax.block_until_ready(result)

    # Reference check against the plain-JAX expression.
    ref = single_variance_forward_xla(variance)
    assert result.shape == ()
    assert jnp.allclose(result, ref, rtol=1e-5, atol=1e-6), (result, ref)

    print("KERNEL_OK")
</pallas_src>

<mosaic_0001>
module attributes {stable_mosaic.version = 11 : i64} {
  func.func @_single_variance_kernel(%arg0: memref<1xf32, #tpu.memory_space<smem>>, %arg1: memref<1x128xf32, #tpu.memory_space<vmem>>) attributes {dimension_semantics = [], scalar_prefetch = 0 : i64, scratch_operands = 0 : i64, tpu.core_type = #tpu.core_type<tc>} {
    %c0 = arith.constant 0 : index
    %0 = memref.load %arg0[%c0] : memref<1xf32, #tpu.memory_space<smem>>
    %cst = arith.constant 1.000000e+01 : f32
    %1 = arith.mulf %0, %cst : f32
    %2 = vector.broadcast %1 : f32 to vector<1x128xf32>
    %3 = math.exp %2 : vector<1x128xf32>
    %cst_0 = arith.constant 9.99999997E-7 : f32
    %cst_1 = arith.constant 1.000000e+06 : f32
    %4 = vector.broadcast %cst_0 : f32 to vector<1x128xf32>
    %5 = arith.maximumf %4, %3 : vector<1x128xf32>
    %6 = vector.broadcast %cst_1 : f32 to vector<1x128xf32>
    %7 = arith.minimumf %6, %5 : vector<1x128xf32>
    %c0_2 = arith.constant 0 : index
    %c0_3 = arith.constant 0 : index
    %8 = vector.load %arg1[%c0_2, %c0_3] : memref<1x128xf32, #tpu.memory_space<vmem>>, vector<1x128xf32>
    tpu.vector_store %arg1[%c0_2, %c0_3], %7 {strides = array<i32>} : memref<1x128xf32, #tpu.memory_space<vmem>>, vector<1x128xf32>,
    return
  }
}

</mosaic_0001>

<llo_original>
// kernel: tpu_custom_call.1
$region0: #{tpu_custom_call.1}
  #allocation0 [shape = 'u32[]', space=smem, size = 0x4, offset = 0x4, fixed_abs, tag = 'smem constant byte address 0x4 - core index']
  #allocation1 [shape = 'u32[144,128]{1,0:T(1,128)}', space=vmem, size = 0x12000, scoped, tag = 'internal scratch']
  #allocation2 [shape = 'f32[1]{0:T(128)S(6)}', space=smem, size = 0x200, scoped, tag = 'scoped memory for tpu_custom_call.1']
  %s0 = inlined_call_operand.<no memory space> [shape: f32[1], index: 0, kind: input, shape index: {}]
  %s1 = inlined_call_operand.hbm [shape: f32[1,128], index: 1, kind: output, shape index: {}]
  %s2 = sld [smem:[#allocation0]]
  $region14: #{tpu_custom_call.1} parent=0
    _
  %s4 = ssub.s32 1, %s2
  %s5 = scalar_select 0, %s4, %s2
  %6 = sst [smem:[#allocation2]] %s0
  $region1: #{tpu_custom_call.1} parent=0
    #allocation3 [shape = 'u8[512]{0}', space=vmem, size = 0x400, scoped, tag = 'output window, operand 0, single buffered']
    #allocation4 [shape = 's32[1]{0}', space=sflag, size = 0x4, scoped, tag = 'scoped memory for tpu_custom_call.1']
    %7 = vsyncpa [#allocation4], 0
    // Predicated region
    $region2: #{tpu_custom_call.1} parent=1 // pred_check
      _
    $region3: #{tpu_custom_call.1} parent=1 // pred_check_branch
      %9 = sbr.rel (0) target = $region5
    $region4: #{tpu_custom_call.1} parent=1 // pred_region
      _
    $region5: #{tpu_custom_call.1} parent=1 // pred_fallthru
      _
    %s10 = sld [smem:[#allocation2]]
    %s11 = smul.f32 %s10, 10.0
    %v12 = vstv %s11
    %v13 = vmul.f32 %v12, 1.442695
    %v14 = vpow.pop %v13
    %v15 = vmax.f32 %v14, 1e-06
    %v16 = vmin.f32 %v15, 1000000.0
    %17 = vst [vmem:[#allocation3] sm:$0x1] %v16
    // Predicated region
    $region6: #{tpu_custom_call.1} parent=1 // pred_check
      _
    $region7: #{tpu_custom_call.1} parent=1 // pred_check_branch
      %19 = sbr.rel (0) target = $region9
    $region8: #{tpu_custom_call.1} parent=1 // pred_region
      %s21 = ssub.s32 16, 16
      %22 = vsyncadd [#allocation4], %s21
      %s24 = sshll.u32 [#allocation3], 4
      %s25 = int_to_ptr.vmem [resolvable:$true] %s24
      %27 = dma.vmem_to_hbm [thread:$0]  %s25, 16, %s1, [#allocation4]
    $region9: #{tpu_custom_call.1} parent=1 // pred_fallthru
      _
    // Predicated region
    $region10: #{tpu_custom_call.1} parent=1 // pred_check
      _
    $region11: #{tpu_custom_call.1} parent=1 // pred_check_branch
      %29 = sbr.rel (0) target = $region13
    $region12: #{tpu_custom_call.1} parent=1 // pred_region
      %30 = dma.done [#allocation4], 16
    $region13: #{tpu_custom_call.1} parent=1 // pred_fallthru
      _
    %31 = vsyncpa [#allocation4], 1

</llo_original>
